<compile_context>
chip_gen: v6e
topology: v6e:2x2x1
jax: 0.10.0
libtpu: 0.0.40
codegen_flags: <defaults>
</compile_context>

<pallas_src>
import functools

import jax
import jax.numpy as jnp
import numpy as np
from jax.experimental import pallas as pl
from jax.experimental.pallas import tpu as pltpu


# ----------------------------- Pallas kernel --------------------------------------

def _pixelwise_norm_kernel(x_ref, o_ref, *, epsilon):
    # Block: (1, C, TR, S).  Channel axis (axis=1) is neither the sublane nor the lane
    # axis, so the reduction is plain elementwise VPU adds across vregs and the
    # broadcast back over C is free.
    x = x_ref[...]
    xf = x.astype(jnp.float32)
    ssq = jnp.sum(xf * xf, axis=1, keepdims=True)                # (1, 1, TR, S) f32
    # `epsilon` is a Python float -> folded as a literal (no captured const array).
    inv = pl.reciprocal(jnp.sqrt(ssq) + epsilon, approx=False)   # exact reciprocal
    o_ref[...] = (xf * inv).astype(o_ref.dtype)


# ----------------------------- tiling helpers --------------------------------------

def _divisors(n):
    return [d for d in range(1, n + 1) if n % d == 0]


def _hw_budgets(itemsize):
    """(per-block HBM-tile budget, VMEM capacity). Generation-aware, safe fallbacks."""
    vmem_cap = 64 << 20                       # conservative default (v7x-sized VMEM)
    try:
        vmem_cap = int(pltpu.get_tpu_info().vmem_capacity_bytes)
    except Exception:
        pass
    kind = ""
    try:
        kind = jax.devices()[0].device_kind.lower()
    except Exception:
        pass
    # Kernel is purely HBM-bandwidth-bound; bigger blocks amortize the ~0.35us/step
    # grid overhead.  Per block we hold: 2x double-buffered input + 2x output blocks
    # (native dtype) plus ~3 block-sized f32 working copies inside the kernel.
    per_block_cost = 4.0 + 3.0 * (4.0 / itemsize)
    block_budget = int(0.70 * vmem_cap / per_block_cost)
    if ("v5e" in kind) or ("v5 lite" in kind) or ("v5lite" in kind):
        block_budget = min(block_budget, 4 << 20)   # v5e: modest blocks already amortize
    block_budget = max(min(block_budget, 8 << 20), 512 << 10)
    return block_budget, vmem_cap


def _choose_lane_width(L, C, itemsize, budget):
    """Pick lane width S | L, S % 128 == 0 (L is already a multiple of 128)."""
    cands = [s for s in _divisors(L) if s % 128 == 0]

    def score(s):
        rows = L // s
        min_rows = min(8, rows)
        fits = C * min_rows * s * itemsize <= budget
        # prefer: minimal block fits budget > leaves >=8 rows (sublane tiling / grid
        # depth) > widest lane if it fits, narrowest otherwise.
        return (fits, rows >= 8, s if fits else -s)

    return max(cands, key=score)


def _choose_row_tile(R, row_bytes, batch, budget, sub_mult, min_steps=4):
    """Pick TR | R with TR % 8 == 0 or TR == R (legality), maximizing block size while
    fitting the budget and keeping a few pipelined/parallel grid steps."""
    legal = [d for d in _divisors(R) if d == R or d % 8 == 0]

    def score(d):
        fits = d * row_bytes <= budget
        steps = batch * (R // d)
        aligned = (d % sub_mult == 0) or (d == R)   # dtype-native sublane tile
        return (fits, steps >= min_steps, aligned, d if fits else -d)

    return max(legal, key=score)


# ----------------------------- wrapper ----------------------------------------------

def pixelwise_norm(x, epsilon=1e-8):
    """x / (||x||_2 over dim=1, keepdim=True) + eps) for (B, C, *spatial) tensors."""
    if x.ndim < 2:
        raise ValueError("expected input of rank >= 2 (N, C, ...)")
    orig_shape = x.shape
    B, C = int(orig_shape[0]), int(orig_shape[1])
    L = int(np.prod(orig_shape[2:], dtype=np.int64)) if x.ndim > 2 else 1

    itemsize = jnp.dtype(x.dtype).itemsize
    sub_mult = {4: 8, 2: 16, 1: 32}.get(itemsize, 8)
    block_budget, vmem_cap = _hw_budgets(itemsize)

    # Flatten spatial dims (free view, NCHW is row-major contiguous) and pad the pixel
    # axis to a multiple of 128 so stores are lane-dense and tiling is always legal.
    xl = x.reshape(B, C, L)
    L_pad = int(pl.cdiv(max(L, 1), 128)) * 128
    if L_pad != L:
        xl = jnp.pad(xl, ((0, 0), (0, 0), (0, L_pad - L)))

    S = _choose_lane_width(L_pad, C, itemsize, block_budget)
    R = L_pad // S
    row_bytes = C * S * itemsize
    TR = _choose_row_tile(R, row_bytes, B, block_budget, sub_mult)

    xr = xl.reshape(B, C, R, S)

    block_bytes = C * TR * S * itemsize
    block_f32_bytes = C * TR * S * 4
    vmem_need = 4 * block_bytes + 3 * block_f32_bytes + (2 << 20)
    vmem_limit = int(min(max(vmem_need, 32 << 20), int(0.85 * vmem_cap)))

    spec = pl.BlockSpec((1, C, TR, S), lambda b, r: (b, 0, r, 0))
    out = pl.pallas_call(
        functools.partial(_pixelwise_norm_kernel, epsilon=float(epsilon)),
        out_shape=jax.ShapeDtypeStruct(xr.shape, x.dtype),
        grid_spec=pltpu.PrefetchScalarGridSpec(
            num_scalar_prefetch=0,
            grid=(B, R // TR),
            in_specs=[spec],
            out_specs=spec,
        ),
        compiler_params=pltpu.CompilerParams(
            dimension_semantics=("parallel", "parallel"),
            vmem_limit_bytes=vmem_limit,
        ),
    )(xr)

    out = out.reshape(B, C, L_pad)
    if L_pad != L:
        out = out[:, :, :L]
    return out.reshape(orig_shape)


# ----------------------------- Module wrapper --------------------------------------

class PixelwiseNorm:
    """Mirror of the PyTorch PixelwiseNorm forward semantics (NCHW input)."""

    def __init__(self, epsilon=1e-8):
        self.epsilon = float(epsilon)

    def __call__(self, x):
        return pixelwise_norm(x, self.epsilon)


# ----------------------------- demo / smoke test -----------------------------------

if __name__ == "__main__":
    key = jax.random.PRNGKey(0)
    k1, k2, k3 = jax.random.split(key, 3)

    def ref(x, eps=1e-8):
        xf = x.astype(jnp.float32)
        n = jnp.sqrt(jnp.sum(xf * xf, axis=1, keepdims=True))
        return xf / (n + eps)

    norm = PixelwiseNorm()

    # Small NCHW input like the PyTorch module would see: batch=2, channels=4, 16x16.
    x1 = jax.random.normal(k1, (2, 4, 16, 16), jnp.float32)
    y1 = jax.jit(norm.__call__)(x1)
    jax.block_until_ready(y1)
    assert y1.shape == x1.shape
    np.testing.assert_allclose(np.asarray(y1), np.asarray(ref(x1)), rtol=1e-5, atol=1e-6)
    assert bool(jnp.all(jnp.isfinite(y1)))

    # Larger spatial extent exercising the (R, S) refactor + row tiling path.
    x2 = jax.random.normal(k2, (2, 8, 64, 256), jnp.float32)
    y2 = jax.jit(norm.__call__)(x2)
    jax.block_until_ready(y2)
    assert y2.shape == x2.shape
    np.testing.assert_allclose(np.asarray(y2), np.asarray(ref(x2)), rtol=1e-5, atol=1e-6)

    # bf16 activations exercising dtype-true budgeting / sublane multiple.
    x3 = jax.random.normal(k3, (2, 8, 16, 16), jnp.float32).astype(jnp.bfloat16)
    y3 = jax.jit(norm.__call__)(x3)
    jax.block_until_ready(y3)
    assert y3.shape == x3.shape
    np.testing.assert_allclose(
        np.asarray(y3.astype(jnp.float32)), np.asarray(ref(x3)), rtol=2e-2, atol=2e-2)

    print("KERNEL_OK")
</pallas_src>

<mosaic_0001>
module attributes {stable_mosaic.version = 11 : i64} {
  func.func @_pixelwise_norm_kernel(%arg0: i32, %arg1: i32, %arg2: memref<1x4x1x256xf32, #tpu.memory_space<vmem>>, %arg3: memref<1x4x1x256xf32, #tpu.memory_space<vmem>>) attributes {dimension_semantics = [#tpu.dimension_semantics<parallel>, #tpu.dimension_semantics<parallel>], iteration_bounds = array<i64: 2, 1>, scalar_prefetch = 0 : i64, scratch_operands = 0 : i64, tpu.core_type = #tpu.core_type<tc>, window_params = [{transform_indices = @transform_0, window_bounds = array<i64: 1, 4, 1, 256>}, {transform_indices = @transform_1, window_bounds = array<i64: 1, 4, 1, 256>}]} {
    %c0 = arith.constant 0 : index
    %c0_0 = arith.constant 0 : index
    %c0_1 = arith.constant 0 : index
    %c0_2 = arith.constant 0 : index
    %0 = vector.load %arg2[%c0, %c0_0, %c0_1, %c0_2] : memref<1x4x1x256xf32, #tpu.memory_space<vmem>>, vector<1x4x1x256xf32>
    %1 = arith.mulf %0, %0 : vector<1x4x1x256xf32>
    %cst = arith.constant dense<0.000000e+00> : vector<1x1x256xf32>
    %2 = vector.multi_reduction <add>, %1, %cst [1] : vector<1x4x1x256xf32> to vector<1x1x256xf32>
    %3 = vector.shape_cast %2 : vector<1x1x256xf32> to vector<1x1x1x256xf32>
    %4 = math.sqrt %3 : vector<1x1x1x256xf32>
    %cst_3 = arith.constant 9.99999993E-9 : f32
    %5 = vector.broadcast %cst_3 : f32 to vector<1x1x1x256xf32>
    %6 = arith.addf %4, %5 : vector<1x1x1x256xf32>
    %7 = tpu.reciprocal %6 : vector<1x1x1x256xf32> -> vector<1x1x1x256xf32>
    %8 = vector.broadcast %7 : vector<1x1x1x256xf32> to vector<1x4x1x256xf32>
    %9 = arith.mulf %0, %8 : vector<1x4x1x256xf32>
    %c0_4 = arith.constant 0 : index
    %c0_5 = arith.constant 0 : index
    %c0_6 = arith.constant 0 : index
    %c0_7 = arith.constant 0 : index
    %10 = vector.load %arg3[%c0_4, %c0_5, %c0_6, %c0_7] : memref<1x4x1x256xf32, #tpu.memory_space<vmem>>, vector<1x4x1x256xf32>
    tpu.vector_store %arg3[%c0_4, %c0_5, %c0_6, %c0_7], %9 {strides = array<i32>} : memref<1x4x1x256xf32, #tpu.memory_space<vmem>>, vector<1x4x1x256xf32>,
    return
  }
  func.func @transform_0(%arg0: i32, %arg1: i32) -> (i32, i32, i32, i32) {
    %c0_i32 = arith.constant 0 : i32
    %c0_i32_0 = arith.constant 0 : i32
    %c0_i32_1 = arith.constant 0 : i32
    return %arg0, %c0_i32, %arg1, %c0_i32_0 : i32, i32, i32, i32
  }
  func.func @transform_1(%arg0: i32, %arg1: i32) -> (i32, i32, i32, i32) {
    %c0_i32 = arith.constant 0 : i32
    %c0_i32_0 = arith.constant 0 : i32
    %c0_i32_1 = arith.constant 0 : i32
    return %arg0, %c0_i32, %arg1, %c0_i32_0 : i32, i32, i32, i32
  }
}

</mosaic_0001>

<llo_original>
// kernel: a_call__.1
$region0: #{a_call__.1}
  #allocation0 [shape = 'u32[]', space=smem, size = 0x4, offset = 0x4, fixed_abs, tag = 'smem constant byte address 0x4 - core index']
  #allocation1 [shape = 'u32[144,128]{1,0:T(1,128)}', space=vmem, size = 0x12000, scoped, tag = 'internal scratch']
  %s0 = inlined_call_operand.vmem [shape: f32[2,4,1,256], index: 0, kind: input, shape index: {}]
  %s1 = inlined_call_operand.vmem [shape: f32[2,4,1,256], index: 1, kind: output, shape index: {}]
  %s2 = sld [smem:[#allocation0]]
  $region37: #{a_call__.1} parent=0
    _
  %s4 = ssub.s32 1, %s2
  %s5 = scalar_select 0, %s4, %s2
  loop: start=0, step=1, limit=4
  $region2: #{a_call__.1} parent=0 // loop_pre_header
    _
  $region3: #{a_call__.1} parent=0 // loop_header
    %s7 = sphi 0, %s11
    %p8 = scmp.ge.s32.totalorder %s7, 4
    %s14 = sphi 0, %s26
    %s15 = sphi 0, %s22
    %s16 = sphi 0, %s14
    %s17 = sphi 0, %s15
    %s18 = sphi 0, %s16
    %s19 = sphi 0, %s17
    %s31 = sphi 0, %s33
    %s34 = sphi 0, %s31
    %s35 = sphi 0, %s34
    %s51 = sphi 0, %s35
    %s59 = sphi 0, %s61
    %s62 = sphi 0, %s59
    %s63 = sphi 0, %s62
    %s79 = sphi 0, %s63
  $region4: #{a_call__.1} parent=0 // loop_header_branch
    %10 = sbr.rel (%p8) target = $region8
  $region5: #{a_call__.1} parent=0 // loop_body
    %s12 = ssub.s32 %s7, 1
    %s13 = ssub.s32 %s7, 2
    %s20 = sadd.s32 1, %s15
    %p21 = scmp.ge.s32.totalorder %s20, 1
    %s22 = scalar_select %p21, 0, %s20
    %s23 = sadd.s32 1, %s14
    %s24 = scalar_select %p21, %s23, %s14
    %p25 = scmp.ge.s32.totalorder %s24, 2
    %s26 = scalar_select %p25, 0, %s24
    %s27 = ssub.s32 %s14, %s26
    %s28 = ssub.s32 %s15, %s22
    %s29 = sor.u32 %s27, %s28
    %p30 = scmp.eq.s32.totalorder %s29, 0
    %s32 = sadd.s32 %s31, 1
    %s33 = scalar_select %p30, %s31, %s32
    %p36 = pneg %p30
    %p37 = scmp.eq.s32.totalorder %s7, 1
    %p38 = por %p36, %p37
    %p39 = scmp.ne.s32.totalorder %s31, %s34
    %p40 = scmp.eq.s32.totalorder %s7, 0
    %p41 = por %p39, %p40
    %p42 = scmp.ne.s32.totalorder %s31, %s34
    %p43 = scmp.eq.s32.totalorder %s12, 1
    %p44 = por %p42, %p43
    %p45 = scmp.ne.s32.totalorder %s34, %s35
    %p46 = scmp.eq.s32.totalorder %s12, 0
    %p47 = por %p45, %p46
    %p48 = scmp.ne.s32.totalorder %s34, %s35
    %p49 = scmp.eq.s32.totalorder %s13, 1
    %p50 = por %p48, %p49
    %p52 = scmp.ne.s32.totalorder %s35, %s51
    %p53 = scmp.eq.s32.totalorder %s13, 0
    %p54 = por %p52, %p53
    %s55 = ssub.s32 %s14, %s26
    %s56 = ssub.s32 %s15, %s22
    %s57 = sor.u32 %s55, %s56
    %p58 = scmp.eq.s32.totalorder %s57, 0
    %s60 = sadd.s32 %s59, 1
    %s61 = scalar_select %p58, %s59, %s60
    %p64 = pneg %p58
    %p65 = scmp.eq.s32.totalorder %s7, 1
    %p66 = por %p64, %p65
    %p67 = scmp.ne.s32.totalorder %s59, %s62
    %p68 = scmp.eq.s32.totalorder %s7, 0
    %p69 = por %p67, %p68
    %p70 = scmp.ne.s32.totalorder %s59, %s62
    %p71 = scmp.eq.s32.totalorder %s12, 1
    %p72 = por %p70, %p71
    %p73 = scmp.ne.s32.totalorder %s62, %s63
    %p74 = scmp.eq.s32.totalorder %s12, 0
    %p75 = por %p73, %p74
    %p76 = scmp.ne.s32.totalorder %s62, %s63
    %p77 = scmp.eq.s32.totalorder %s13, 1
    %p78 = por %p76, %p77
    %p80 = scmp.ne.s32.totalorder %s63, %s79
    %p81 = scmp.eq.s32.totalorder %s13, 0
    %p82 = por %p80, %p81
    %p83 = scmp.le.s32.totalorder 1, %s7
    %p84 = scmp.lt.s32.totalorder %s7, 3
    %p85 = pnand %p83, %p84
    %p86 = pneg %p85
    // Predicated region
    $region9: #{a_call__.1} parent=5 // pred_check
      _
    $region10: #{a_call__.1} parent=5 // pred_check_branch
      %88 = sbr.rel (%p85) target = $region12
    $region11: #{a_call__.1} parent=5 // pred_region
      %s89 = ssub.s32 %s7, 1
    $region12: #{a_call__.1} parent=5 // pred_fallthru
      _
    %p90 = scmp.lt.s32.totalorder %s7, 2
    // Predicated region
    $region13: #{a_call__.1} parent=5 // pred_check
      %p91 = pneg %p90
    $region14: #{a_call__.1} parent=5 // pred_check_branch
      %93 = sbr.rel (%p91) target = $region16
    $region15: #{a_call__.1} parent=5 // pred_region
      // Predicated region
      $region17: #{a_call__.1} parent=15 // pred_check
        %p94 = pneg %p41
      $region18: #{a_call__.1} parent=15 // pred_check_branch
        %96 = sbr.rel (%p94) target = $region20
      $region19: #{a_call__.1} parent=15 // pred_region
        %p97 = scmp.lt.s32.totalorder %s14, 1
        %s98 = scalar_select %p97, %s14, 1
        %p99 = scmp.lt.s32.totalorder %s15, 0
        %s100 = scalar_select %p99, %s15, 0
        %s101 = smul.addr %s100, 2
        %s102 = smul.addr %s98, 8
        %s103 = sadd.s32 %s101, %s102
        %s104 = scalar_lea.vmem %s0, %s103
      $region20: #{a_call__.1} parent=15 // pred_fallthru
        _
    $region16: #{a_call__.1} parent=5 // pred_fallthru
      _
    %p105 = scmp.le.s32.totalorder 1, %s7
    %p106 = scmp.lt.s32.totalorder %s7, 3
    %p107 = pnand %p105, %p106
    %p108 = pneg %p107
    // Predicated region
    $region21: #{a_call__.1} parent=5 // pred_check
      _
    $region22: #{a_call__.1} parent=5 // pred_check_branch
      %110 = sbr.rel (%p107) target = $region24
    $region23: #{a_call__.1} parent=5 // pred_region
      %s111 = ssub.s32 %s7, 1
      %p112 = scmp.lt.s32.totalorder %s16, 1
      %s113 = scalar_select %p112, %s16, 1
      %p114 = scmp.lt.s32.totalorder %s17, 0
      %s115 = scalar_select %p114, %s17, 0
      %s116 = smul.addr %s115, 2
      %s117 = smul.addr %s113, 8
      %s118 = sadd.s32 %s116, %s117
      %s119 = scalar_lea.vmem %s0, %s118
      %p120 = pneg %p47
      %p121 = pneg %p44
      %p122 = pneg %p75
      %p123 = pneg %p72
      %p124 = scmp.lt.s32.totalorder %s16, 1
      %s125 = scalar_select %p124, %s16, 1
      %p126 = scmp.lt.s32.totalorder %s17, 0
      %s127 = scalar_select %p126, %s17, 0
      %s128 = smul.addr %s127, 2
      %s129 = smul.addr %s125, 8
      %s130 = sadd.s32 %s128, %s129
      %s131 = scalar_lea.vmem %s1, %s130
      %p132 = scmp.lt.s32.totalorder %s16, 1
      %s133 = scalar_select %p132, %s16, 1
      %p134 = scmp.lt.s32.totalorder %s17, 0
      %s135 = scalar_select %p134, %s17, 0
      %s136 = smul.addr %s135, 2
      %s137 = smul.addr %s133, 8
      %s138 = sadd.s32 %s136, %s137
      %s139 = scalar_lea.vmem %s0, %s138
      %p140 = scmp.lt.s32.totalorder %s16, 1
      %s141 = scalar_select %p140, %s16, 1
      %p142 = scmp.lt.s32.totalorder %s17, 0
      %s143 = scalar_select %p142, %s17, 0
      %s144 = smul.addr %s143, 2
      %s145 = smul.addr %s141, 8
      %s146 = sadd.s32 %s144, %s145
      %s147 = scalar_lea.vmem %s1, %s146
      %v148 = vld [vmem:[%s139] sm:$0x3]
      %v149 = vld [vmem:[%s139 + $0x2] sm:$0x3]
      %v150 = vld [vmem:[%s139 + $0x4] sm:$0x3]
      %v151 = vld [vmem:[%s139 + $0x6] sm:$0x3]
      %v152 = vmul.f32 %v148, %v148
      %v153 = vmul.f32 %v149, %v149
      %v154 = vmul.f32 %v150, %v150
      %v155 = vmul.f32 %v151, %v151
      %v160 = vlaneseq
      %v161 = vshrl.u32 %v160, 7
      %v162 = vsub.s32 0, %v161
      %v163 = vrot.slane %v152, %v162
      %v164 = vlaneseq
      %v165 = vshrl.u32 %v164, 7
      %v166 = vsub.s32 1, %v165
      %v167 = vrot.slane %v152, %v166
      %v168 = vlaneseq
      %v169 = vshrl.u32 %v168, 7
      %v170 = vsub.s32 0, %v169
      %v171 = vrot.slane %v153, %v170
      %v172 = vlaneseq
      %v173 = vshrl.u32 %v172, 7
      %v174 = vsub.s32 1, %v173
      %v175 = vrot.slane %v153, %v174
      %v176 = vlaneseq
      %v177 = vshrl.u32 %v176, 7
      %v178 = vsub.s32 0, %v177
      %v179 = vrot.slane %v154, %v178
      %v180 = vlaneseq
      %v181 = vshrl.u32 %v180, 7
      %v182 = vsub.s32 1, %v181
      %v183 = vrot.slane %v154, %v182
      %v184 = vlaneseq
      %v185 = vshrl.u32 %v184, 7
      %v186 = vsub.s32 0, %v185
      %v187 = vrot.slane %v155, %v186
      %v188 = vlaneseq
      %v189 = vshrl.u32 %v188, 7
      %v190 = vsub.s32 1, %v189
      %v191 = vrot.slane %v155, %v190
      %vm200 = vcmask 1040384
      %v201 = vsel %vm200, %v163, 0.0
      %v202 = vsel %vm200, %v171, 0.0
      %v203 = vadd.f32 %v201, %v202
      %v204 = vsel %vm200, %v179, 0.0
      %v205 = vadd.f32 %v203, %v204
      %v206 = vsel %vm200, %v187, 0.0
      %v207 = vadd.f32 %v205, %v206
      %v208 = vsel %vm200, %v167, 0.0
      %v209 = vsel %vm200, %v175, 0.0
      %v210 = vadd.f32 %v208, %v209
      %v211 = vsel %vm200, %v183, 0.0
      %v212 = vadd.f32 %v210, %v211
      %v213 = vsel %vm200, %v191, 0.0
      %v214 = vadd.f32 %v212, %v213
      %v215 = vrsqrt.pop %v207
      %v216 = vmul.f32 %v207, %v215
      %vm217 = vcmp.eq.f32.partialorder %v207, inf
      %v218 = vsel %vm217, %v207, %v216
      %vm219 = vcmp.eq.f32.partialorder %v207, 0.0
      %v220 = vand.u32 %v207, 2147483648
      %v221 = vsel %vm219, %v220, %v218
      %v222 = vrsqrt.pop %v214
      %v223 = vmul.f32 %v214, %v222
      %vm224 = vcmp.eq.f32.partialorder %v214, inf
      %v225 = vsel %vm224, %v214, %v223
      %vm226 = vcmp.eq.f32.partialorder %v214, 0.0
      %v227 = vand.u32 %v214, 2147483648
      %v228 = vsel %vm226, %v227, %v225
      %v229 = vadd.f32 %v221, 1e-08
      %v230 = vadd.f32 %v228, 1e-08
      %v231 = vrcp.pop %v229
      %v232 = vrcp.pop %v230
      %v235 = vcombine.low %v231, %v232
      %v237 = vunpack.c.l.s4 1966171168
      %v238 = vunpack.c.0.s8 %v237
      %v239 = vlaneseq
      %v240 = vshrl.u32 %v239, 7
      %v241 = vsub.s32 %v238, %v240
      %v242 = vrot.slane %v235, %v241
      %v244 = vunpack.c.l.s4 1966171168
      %v245 = vunpack.c.0.s8 %v244
      %v246 = vlaneseq
      %v247 = vshrl.u32 %v246, 7
      %v248 = vsub.s32 %v245, %v247
      %v249 = vrot.slane %v242, %v248
      %v251 = vmul.f32 %v148, %v249
      %v252 = vmul.f32 %v149, %v249
      %v253 = vmul.f32 %v150, %v249
      %v254 = vmul.f32 %v151, %v249
      %v255 = vlaneseq
      %vm256 = vcmp.ge.s32.totalorder %v255, 0
      %vm257 = vcmp.lt.s32.totalorder %v255, 256
      %vm258 = vmand %vm256, %vm257
      %259 = vst.msk [vmem:[%s147] sm:$0x3] %vm258, %v251
      %260 = vst.msk [vmem:[%s147 + $0x2] sm:$0x3] %vm258, %v252
      %261 = vst.msk [vmem:[%s147 + $0x4] sm:$0x3] %vm258, %v253
      %262 = vst.msk [vmem:[%s147 + $0x6] sm:$0x3] %vm258, %v254
      %p263 = scmp.lt.s32.totalorder %s16, 1
      %s264 = scalar_select %p263, %s16, 1
      %p265 = scmp.lt.s32.totalorder %s17, 0
      %s266 = scalar_select %p265, %s17, 0
      %s267 = smul.addr %s266, 2
      %s268 = smul.addr %s264, 8
      %s269 = sadd.s32 %s267, %s268
      %s270 = scalar_lea.vmem %s1, %s269
      // Predicated region
      $region25: #{a_call__.1} parent=23 // pred_check
        %p271 = pneg %p72
      $region26: #{a_call__.1} parent=23 // pred_check_branch
        %273 = sbr.rel (%p271) target = $region28
      $region27: #{a_call__.1} parent=23 // pred_region
        _
      $region28: #{a_call__.1} parent=23 // pred_fallthru
        _
    $region24: #{a_call__.1} parent=5 // pred_fallthru
      _
    %p274 = scmp.le.s32.totalorder 2, %s7
    // Predicated region
    $region29: #{a_call__.1} parent=5 // pred_check
      %p275 = pneg %p274
    $region30: #{a_call__.1} parent=5 // pred_check_branch
      %277 = sbr.rel (%p275) target = $region32
    $region31: #{a_call__.1} parent=5 // pred_region
      %s278 = ssub.s32 %s7, 2
      // Predicated region
      $region33: #{a_call__.1} parent=31 // pred_check
        %p279 = pneg %p78
      $region34: #{a_call__.1} parent=31 // pred_check_branch
        %281 = sbr.rel (%p279) target = $region36
      $region35: #{a_call__.1} parent=31 // pred_region
        %p282 = scmp.lt.s32.totalorder %s18, 1
        %s283 = scalar_select %p282, %s18, 1
        %p284 = scmp.lt.s32.totalorder %s19, 0
        %s285 = scalar_select %p284, %s19, 0
        %s286 = smul.addr %s285, 2
        %s287 = smul.addr %s283, 8
        %s288 = sadd.s32 %s286, %s287
        %s289 = scalar_lea.vmem %s1, %s288
      $region36: #{a_call__.1} parent=31 // pred_fallthru
        _
    $region32: #{a_call__.1} parent=5 // pred_fallthru
      _
  $region6: #{a_call__.1} parent=0 // loop_footer
    %s11 = sadd.s32 1, %s7
  $region7: #{a_call__.1} parent=0 // loop_footer_branch
    %6 = sbr.rel target = $region3
  $region8: #{a_call__.1} parent=0 // loop_exit
    _

</llo_original>
